<compile_context>
chip_gen: v7x
topology: tpu7x:2x2x1
jax: 0.10.0
libtpu: 0.0.40
codegen_flags: <defaults>
</compile_context>

<pallas_src>
import functools

import jax
import jax.numpy as jnp
from jax.experimental import pallas as pl
from jax.experimental.pallas import tpu as pltpu


# ------------------------------- kernels ------------------------------------


def _max_abs_tanh_kernel(x_ref, max_ref):
    """Accumulate the global max(|tanh(x)|) over row tiles into a (1,1) block."""

    @pl.when(pl.program_id(0) == 0)
    def _():
        # |tanh| >= 0, so 0 is a safe identity for the running max.
        max_ref[...] = jnp.zeros_like(max_ref)

    t = jnp.abs(jnp.tanh(x_ref[...].astype(jnp.float32)))
    tile_max = jnp.max(t, axis=1, keepdims=True)          # lane reduce
    tile_max = jnp.max(tile_max, axis=0, keepdims=True)   # sublane reduce -> (1, 1)
    max_ref[...] = jnp.maximum(max_ref[...], tile_max)


def _quantize_kernel(maxv_ref, x_ref, wq_ref, lvl_ref, *, n):
    """Quantize one tile given the (SMEM-resident) global max_val scalar."""
    max_val = maxv_ref[0, 0]
    t = jnp.tanh(x_ref[...].astype(jnp.float32))
    w = t / (2.0 * max_val) + 0.5
    wq_int = jnp.round(w * n) / n                 # round-half-to-even == torch.round
    wq = (2.0 * wq_int - 1.0) * max_val
    wq_ref[...] = wq.astype(wq_ref.dtype)
    lvl_ref[...] = (wq_int * n).astype(lvl_ref.dtype)


# ------------------------------- wrapper -------------------------------------


def _choose_layout(total):
    """Pick a lane-dense (rows, cols) layout and a row tile size.

    cols is a multiple of 128 (lane-dense stores); rows a multiple of 8 (sublanes).
    Prefers a layout that needs no padding; tiles rows so per-tile f32 footprint
    stays ~<= 1 MiB (fits scoped VMEM with double-buffered in + 2 outs on all gens).
    """
    rows = cols = None
    for c in (1024, 512, 256, 128):
        if total % c == 0 and (total // c) % 8 == 0:
            cols = c
            rows = total // c
            break
    if cols is None:
        cols = 512 if total > 65536 else 128
        rows = -(-total // cols)
        rows = ((rows + 7) // 8) * 8

    if rows > 256:
        row_tile = None
        for rt in (256, 128, 64, 32):
            if rows % rt == 0:
                row_tile = rt
                break
        if row_tile is None:
            row_tile = 128
            rows = ((rows + 127) // 128) * 128
    else:
        row_tile = rows
    return rows, cols, row_tile, rows * cols


def weight_quantize(x, wbit):
    """Pallas implementation of weight_quantize_fn.forward for wbit != 32.

    Returns (weight_q, weight_q_int * (num_levels - 1), S), matching the module.
    """
    assert wbit != 32, "wbit == 32 branch not supported (see TODO at top of file)"
    orig_shape = x.shape
    orig_dtype = x.dtype
    total = int(x.size)

    num_levels = 2 ** (wbit + 1) - 1
    n = float(num_levels - 1)

    rows, cols, row_tile, padded_total = _choose_layout(total)
    num_tiles = rows // row_tile
    itemsize = jnp.dtype(orig_dtype).itemsize

    xf = x.reshape(-1)                      # row-major flatten: no transpose, no copy
    if padded_total != total:
        xf = jnp.pad(xf, (0, padded_total - total))   # zeros: |tanh(0)| = 0, max-safe
    x2d = xf.reshape(rows, cols)

    # ---- pass 1: global max(|tanh(x)|), tiled reduction ----
    max_val = pl.pallas_call(
        _max_abs_tanh_kernel,
        out_shape=jax.ShapeDtypeStruct((1, 1), jnp.float32),
        grid=(num_tiles,),
        in_specs=[pl.BlockSpec((row_tile, cols), lambda i: (i, 0))],
        out_specs=pl.BlockSpec((1, 1), lambda i: (0, 0)),
        compiler_params=pltpu.CompilerParams(dimension_semantics=("arbitrary",)),
        cost_estimate=pl.CostEstimate(
            flops=2 * padded_total,
            transcendentals=padded_total,
            bytes_accessed=padded_total * itemsize + 4,
        ),
    )(x2d)

    # ---- pass 2: quantize tiles using the global max (scalar lives in SMEM) ----
    wq2d, lvl2d = pl.pallas_call(
        functools.partial(_quantize_kernel, n=n),
        out_shape=(
            jax.ShapeDtypeStruct((rows, cols), orig_dtype),
            jax.ShapeDtypeStruct((rows, cols), orig_dtype),
        ),
        grid=(num_tiles,),
        in_specs=[
            pl.BlockSpec(memory_space=pltpu.MemorySpace.SMEM),   # max_val scalar
            pl.BlockSpec((row_tile, cols), lambda i: (i, 0)),
        ],
        out_specs=[
            pl.BlockSpec((row_tile, cols), lambda i: (i, 0)),
            pl.BlockSpec((row_tile, cols), lambda i: (i, 0)),
        ],
        compiler_params=pltpu.CompilerParams(dimension_semantics=("parallel",)),
        cost_estimate=pl.CostEstimate(
            flops=8 * padded_total,
            transcendentals=padded_total,
            bytes_accessed=3 * padded_total * itemsize,
        ),
    )(max_val, x2d)

    def _unflatten(a):
        a = a.reshape(-1)
        if padded_total != total:
            a = a[:total]
        return a.reshape(orig_shape)

    weight_q = _unflatten(wq2d)
    levels = _unflatten(lvl2d)
    S = (max_val[0, 0] / float(2 ** wbit - 1)).astype(jnp.float32)
    return weight_q, levels, S


# ------------------------------- reference -----------------------------------


def _reference(x, wbit):
    x = x.astype(jnp.float32)
    num_levels = 2 ** (wbit + 1) - 1
    n = float(num_levels - 1)
    w = jnp.tanh(x)
    max_val = jnp.max(jnp.abs(w))
    S = max_val / float(2 ** wbit - 1)
    w = w / (2 * max_val) + 0.5
    wq_int = jnp.round(w * n) / n
    wq = (2 * wq_int - 1) * max_val
    return wq, wq_int * n, S


# --------------------------------- test --------------------------------------

if __name__ == "__main__":
    key = jax.random.PRNGKey(0)
    WBIT = 4
    # small "weight tensor" shape consistent with the module's usage
    x = jax.random.normal(key, (2, 4, 16, 16), dtype=jnp.float32)

    wq, lvl, S = weight_quantize(x, WBIT)
    (wq, lvl, S) = jax.block_until_ready((wq, lvl, S))

    ref_wq, ref_lvl, ref_S = _reference(x, WBIT)

    assert wq.shape == x.shape and lvl.shape == x.shape

    # Robust comparison: a sub-ulp difference in tanh between the Pallas and XLA
    # paths can flip a round-to-nearest boundary; allow at most a few off-by-one
    # level flips and require tight agreement everywhere else.
    lvl_diff = jnp.abs(lvl - ref_lvl)
    assert float(jnp.max(lvl_diff)) <= 1.001
    assert int(jnp.sum(lvl_diff > 0.5)) <= 4
    agree = lvl_diff < 0.5
    assert float(jnp.max(jnp.where(agree, jnp.abs(wq - ref_wq), 0.0))) <= 1e-5
    assert abs(float(S) - float(ref_S)) <= 1e-5

    print("KERNEL_OK")
</pallas_src>

<mosaic_0001>
module attributes {stable_mosaic.version = 11 : i64} {
  func.func @_max_abs_tanh_kernel(%arg0: i32, %arg1: memref<8x256xf32, #tpu.memory_space<vmem>>, %arg2: memref<1x1xf32, #tpu.memory_space<vmem>>) attributes {dimension_semantics = [#tpu.dimension_semantics<arbitrary>], iteration_bounds = array<i64: 1>, scalar_prefetch = 0 : i64, scratch_operands = 0 : i64, tpu.core_type = #tpu.core_type<tc>, window_params = [{transform_indices = @transform_0, window_bounds = array<i64: 8, 256>}, {pipeline_mode = #tpu.pipeline_mode<synchronous>, transform_indices = @transform_1, window_bounds = array<i64: 1, 1>}]} {
    %c0_i32 = arith.constant 0 : i32
    %0 = arith.cmpi eq, %arg0, %c0_i32 : i32
    %1 = arith.extui %0 : i1 to i32
    %c0_i32_0 = arith.constant 0 : i32
    %2 = arith.cmpi ne, %1, %c0_i32_0 : i32
    scf.if %2 {
      %cst_7 = arith.constant 0.000000e+00 : f32
      %13 = vector.broadcast %cst_7 : f32 to vector<1x1xf32>
      %c0_8 = arith.constant 0 : index
      %c0_9 = arith.constant 0 : index
      %14 = vector.load %arg2[%c0_8, %c0_9] : memref<1x1xf32, #tpu.memory_space<vmem>>, vector<1x1xf32>
      tpu.vector_store %arg2[%c0_8, %c0_9], %13 {strides = array<i32>} : memref<1x1xf32, #tpu.memory_space<vmem>>, vector<1x1xf32>,
    } else {
    }
    %c0 = arith.constant 0 : index
    %c0_1 = arith.constant 0 : index
    %3 = vector.load %arg1[%c0, %c0_1] : memref<8x256xf32, #tpu.memory_space<vmem>>, vector<8x256xf32>
    %4 = math.tanh %3 : vector<8x256xf32>
    %5 = math.absf %4 : vector<8x256xf32>
    %cst = arith.constant dense<0xFF800000> : vector<8xf32>
    %6 = vector.multi_reduction <maximumf>, %5, %cst [1] : vector<8x256xf32> to vector<8xf32>
    %7 = vector.shape_cast %6 : vector<8xf32> to vector<8x1xf32>
    %cst_2 = arith.constant dense<0xFF800000> : vector<1xf32>
    %8 = vector.multi_reduction <maximumf>, %7, %cst_2 [0] : vector<8x1xf32> to vector<1xf32>
    %9 = vector.shape_cast %8 : vector<1xf32> to vector<1x1xf32>
    %c0_3 = arith.constant 0 : index
    %c0_4 = arith.constant 0 : index
    %10 = vector.load %arg2[%c0_3, %c0_4] : memref<1x1xf32, #tpu.memory_space<vmem>>, vector<1x1xf32>
    %11 = arith.maximumf %10, %9 : vector<1x1xf32>
    %c0_5 = arith.constant 0 : index
    %c0_6 = arith.constant 0 : index
    %12 = vector.load %arg2[%c0_5, %c0_6] : memref<1x1xf32, #tpu.memory_space<vmem>>, vector<1x1xf32>
    tpu.vector_store %arg2[%c0_5, %c0_6], %11 {strides = array<i32>} : memref<1x1xf32, #tpu.memory_space<vmem>>, vector<1x1xf32>,
    return
  }
  func.func @transform_0(%arg0: i32) -> (i32, i32) {
    %c0_i32 = arith.constant 0 : i32
    %c0_i32_0 = arith.constant 0 : i32
    return %arg0, %c0_i32 : i32, i32
  }
  func.func @transform_1(%arg0: i32) -> (i32, i32) {
    %c0_i32 = arith.constant 0 : i32
    %c0_i32_0 = arith.constant 0 : i32
    %c0_i32_1 = arith.constant 0 : i32
    return %c0_i32, %c0_i32_0 : i32, i32
  }
}

</mosaic_0001>

<llo_original>
// kernel: tpu_custom_call.1
$region0: #{tpu_custom_call.1}
  #allocation0 [shape = 'u32[]', space=smem, size = 0x4, offset = 0x4, fixed_abs, tag = 'smem constant byte address 0x4 - core index']
  #allocation1 [shape = 'u32[144,128]{1,0:T(1,128)}', space=vmem, size = 0x12000, scoped, tag = 'internal scratch']
  %s0 = inlined_call_operand.hbm [shape: f32[8,256], index: 0, kind: input, shape index: {}]
  %s1 = inlined_call_operand.hbm [shape: f32[1,1], index: 1, kind: output, shape index: {}]
  %s2 = sld [smem:[#allocation0]]
  $region22: #{tpu_custom_call.1} parent=0
    _
  %s4 = ssub.s32 1, %s2
  %s5 = scalar_select 0, %s4, %s2
  $region1: #{tpu_custom_call.1} parent=0
    #allocation2 [shape = 'u8[8192]{0}', space=vmem, size = 0x2000, scoped, tag = 'input window, operand 0, single buffered']
    #allocation3 [shape = 's32[1]{0}', space=sflag, size = 0x4, scoped, tag = 'scoped memory for tpu_custom_call.1']
    #allocation4 [shape = 's32[1]{0}', space=sflag, size = 0x4, scoped, tag = 'scoped memory for tpu_custom_call.1']
    #allocation5 [shape = 'u8[512]{0}', space=vmem, size = 0x400, scoped, tag = 'output window, operand 0, single buffered']
    %6 = vsyncpa [#allocation3], 0
    %7 = vsyncpa [#allocation4], 0
    // Predicated region
    $region2: #{tpu_custom_call.1} parent=1 // pred_check
      _
    $region3: #{tpu_custom_call.1} parent=1 // pred_check_branch
      %9 = sbr.rel (0) target = $region5
    $region4: #{tpu_custom_call.1} parent=1 // pred_region
      %s11 = ssub.s32 256, 256
      %12 = vsyncadd [#allocation3], %s11
      %s14 = sshll.u32 [#allocation2], 4
      %s15 = int_to_ptr.vmem [resolvable:$true] %s14
      %17 = dma.hbm_to_vmem [thread:$0]  %s0, 256, %s15, [#allocation3]
    $region5: #{tpu_custom_call.1} parent=1 // pred_fallthru
      _
    // Predicated region
    $region6: #{tpu_custom_call.1} parent=1 // pred_check
      _
    $region7: #{tpu_custom_call.1} parent=1 // pred_check_branch
      %19 = sbr.rel (0) target = $region9
    $region8: #{tpu_custom_call.1} parent=1 // pred_region
      %20 = dma.done [#allocation3], 256
    $region9: #{tpu_custom_call.1} parent=1 // pred_fallthru
      _
    %p21 = scmp.eq.s32.totalorder 0, 0
    // Predicated region
    $region10: #{tpu_custom_call.1} parent=1 // pred_check
      %p22 = pneg %p21
    $region11: #{tpu_custom_call.1} parent=1 // pred_check_branch
      %24 = sbr.rel (%p22) target = $region13
    $region12: #{tpu_custom_call.1} parent=1 // pred_region
      %vm25 = vcmask 0
      %26 = vst.msk [vmem:[#allocation5] sm:$0x1] %vm25, 0.0
    $region13: #{tpu_custom_call.1} parent=1 // pred_fallthru
      _
    %v27 = vld [vmem:[#allocation2] sm:$0xff]
    %v28 = vld [vmem:[#allocation2 + $0x8] sm:$0xff]
    %v29 = vtanh.pop %v27
    %v30 = vtanh.pop %v28
    %v31 = vand.u32 2147483647, %v29
    %v32 = vand.u32 2147483647, %v30
    %v33 = vmax.f32 %v31, %v32
    %34 = vmax.xlane.f32.xlu0 %v33
    %v35 = vpop.xlane.xlu0 %34
    %v36 = vrot.slane %v35, 4
    %v37 = vmax.f32 %v35, %v36
    %v38 = vrot.slane %v37, 2
    %v39 = vmax.f32 %v37, %v38
    %v40 = vrot.slane %v39, 1
    %v41 = vmax.f32 %v39, %v40
    %v42 = vld [vmem:[#allocation5] sm:$0x1]
    %v43 = vmax.f32 %v42, %v41
    %vm44 = vcmask 0
    %45 = vst.msk [vmem:[#allocation5] sm:$0x1] %vm44, %v43
    // Predicated region
    $region14: #{tpu_custom_call.1} parent=1 // pred_check
      _
    $region15: #{tpu_custom_call.1} parent=1 // pred_check_branch
      %47 = sbr.rel (0) target = $region17
    $region16: #{tpu_custom_call.1} parent=1 // pred_region
      %s49 = ssub.s32 16, 16
      %50 = vsyncadd [#allocation4], %s49
      %s52 = sshll.u32 [#allocation5], 4
      %s53 = int_to_ptr.vmem [resolvable:$true] %s52
      %55 = dma.vmem_to_hbm [thread:$0]  %s53, 16, %s1, [#allocation4]
    $region17: #{tpu_custom_call.1} parent=1 // pred_fallthru
      _
    // Predicated region
    $region18: #{tpu_custom_call.1} parent=1 // pred_check
      _
    $region19: #{tpu_custom_call.1} parent=1 // pred_check_branch
      %57 = sbr.rel (0) target = $region21
    $region20: #{tpu_custom_call.1} parent=1 // pred_region
      %58 = dma.done [#allocation4], 16
    $region21: #{tpu_custom_call.1} parent=1 // pred_fallthru
      _
    %59 = vsyncpa [#allocation3], 1
    %60 = vsyncpa [#allocation4], 1

</llo_original>
